<compile_context>
chip_gen: v7x
topology: tpu7x:2x2x1
jax: 0.10.0
libtpu: 0.0.40
codegen_flags: <defaults>
</compile_context>

<pallas_src>
import functools

import jax
import jax.numpy as jnp
from jax.experimental import pallas as pl
from jax.experimental.pallas import tpu as pltpu

_LANE = 128
# Below this, pallas_call fixed overhead dominates; plain XLA is at roofline.
_MIN_PALLAS_BYTES = 256 * 1024


# ---------------------------------------------------------------------------
# Kernel
# ---------------------------------------------------------------------------
def _activation_kernel(x_ref, o_ref, *, act_type: str):
    x = x_ref[...]
    if act_type == "relu":
        # Scalar (weak-typed) 0: avoids materializing a full-block zero
        # broadcast (JAX does not CSE broadcast_in_dim).
        y = jnp.maximum(x, 0)
    elif act_type == "tanh":
        y = jnp.tanh(x)
    elif act_type == "sigmoid":
        # sigmoid(x) = 0.5 * (tanh(0.5*x) + 1): one EUP op + VPU fma.
        half = jnp.asarray(0.5, dtype=x.dtype)
        y = jnp.tanh(x * half) * half + half
    else:  # 'none' is short-circuited in the wrapper; identity for safety.
        y = x
    o_ref[...] = y.astype(o_ref.dtype)


# ---------------------------------------------------------------------------
# Helpers
# ---------------------------------------------------------------------------
def _sublane_pack(dtype) -> int:
    """Native sublane packing: 8 for 32-bit, 16 for 16-bit, 32 for 8-bit."""
    itemsize = jnp.dtype(dtype).itemsize
    return max(8, 32 // max(itemsize, 1))


def _target_block_bytes() -> int:
    """Per-buffer block size. In+out, double-buffered => 4x this in VMEM."""
    try:
        kind = jax.devices()[0].device_kind.lower()
    except Exception:
        kind = ""
    if any(tag in kind for tag in ("v6", "v7", "7x")):
        return 6 * 1024 * 1024  # 24 MiB total < 32 MiB scoped default (v6e/v7x)
    if "v5" in kind:
        return 3 * 1024 * 1024  # 12 MiB total < 16 MiB scoped default (v5e)
    return 2 * 1024 * 1024      # conservative for older / unknown chips


def _activation_xla(x: jax.Array, act_type: str) -> jax.Array:
    """Plain XLA fused elementwise — used for tiny / 128-misaligned tensors."""
    if act_type == "relu":
        return jnp.maximum(x, 0)
    if act_type == "tanh":
        return jnp.tanh(x)
    if act_type == "sigmoid":
        return jax.nn.sigmoid(x)
    return x


# ---------------------------------------------------------------------------
# Pallas path (requires x.size % 128 == 0)
# ---------------------------------------------------------------------------
@functools.partial(jax.jit, static_argnames=("act_type",))
def _activation_impl(x: jax.Array, act_type: str) -> jax.Array:
    orig_shape = x.shape
    dtype = x.dtype
    itemsize = jnp.dtype(dtype).itemsize
    pack = _sublane_pack(dtype)

    n = x.size
    assert n % _LANE == 0, "wrapper guarantees lane alignment"
    rows = n // _LANE
    slab = x.reshape(rows, _LANE)  # lane-dense slab; reshape is layout-free

    block_bytes = _target_block_bytes()
    target_rows = max(pack, (block_bytes // (_LANE * itemsize)) // pack * pack)

    if rows >= 2 * pack:
        # At least 2 grid steps (ideally even) so the 'parallel' axis shards
        # across both TensorCores on v7x; large blocks amortize per-step cost.
        num_blocks = max(pl.cdiv(rows, target_rows), 2)
        if num_blocks % 2:
            num_blocks += 1
        br = pl.cdiv(pl.cdiv(rows, num_blocks), pack) * pack
        cap = ((rows - 1) // pack) * pack  # keep block < rows => grid >= 2
        block_rows = max(pack, min(br, cap))
    else:
        block_rows = rows  # single full-extent block (valid even if rows % 8 != 0)
    grid = (pl.cdiv(rows, block_rows),)

    kernel = functools.partial(_activation_kernel, act_type=act_type)
    cost = pl.CostEstimate(
        flops=n,
        transcendentals=n if act_type in ("tanh", "sigmoid") else 0,
        bytes_accessed=2 * n * itemsize,
    )

    out_slab = pl.pallas_call(
        kernel,
        out_shape=jax.ShapeDtypeStruct((rows, _LANE), dtype),
        grid_spec=pltpu.PrefetchScalarGridSpec(
            num_scalar_prefetch=0,
            grid=grid,
            in_specs=[pl.BlockSpec((block_rows, _LANE), lambda i: (i, 0))],
            out_specs=pl.BlockSpec((block_rows, _LANE), lambda i: (i, 0)),
        ),
        compiler_params=pltpu.CompilerParams(
            dimension_semantics=("parallel",),
        ),
        cost_estimate=cost,
    )(slab)

    return out_slab.reshape(orig_shape)


# ---------------------------------------------------------------------------
# Public API (mirrors Activation.forward)
# ---------------------------------------------------------------------------
def activation(x: jax.Array, act_type: str = "relu") -> jax.Array:
    """Elementwise activation via a Pallas TPU kernel. Shape preserving."""
    if act_type not in ("relu", "tanh", "sigmoid", "none"):
        raise ValueError(act_type)
    if act_type == "none":
        return x  # identity fast path: no kernel, no HBM traffic
    if x.size == 0:
        return x
    # Match PyTorch's int -> float promotion for tanh/sigmoid (also avoids the
    # kernel silently truncating the 0.5 constant for integer dtypes).
    if act_type in ("tanh", "sigmoid") and not jnp.issubdtype(x.dtype, jnp.floating):
        x = x.astype(jnp.float32)
    n_bytes = x.size * jnp.dtype(x.dtype).itemsize
    if n_bytes < _MIN_PALLAS_BYTES or x.size % _LANE != 0:
        # Tiny: launch overhead dominates. Misaligned: pad/slice around the
        # opaque pallas_call would add full extra HBM passes. XLA wins both.
        return _activation_xla(x, act_type)
    return _activation_impl(x, act_type)


# ---------------------------------------------------------------------------
# Demo / self-test
# ---------------------------------------------------------------------------
if __name__ == "__main__":
    key = jax.random.PRNGKey(0)
    # Small NCHW input consistent with typical conv-net usage of this module.
    x = jax.random.normal(key, (2, 4, 16, 16), dtype=jnp.float32)

    refs = {
        "relu": lambda v: jnp.maximum(v, 0.0),
        "tanh": jnp.tanh,
        "sigmoid": jax.nn.sigmoid,
        "none": lambda v: v,
    }

    ok = True

    # Public wrapper (small input routes to the fused-XLA fast path).
    for act_type, ref_fn in refs.items():
        y = jax.block_until_ready(activation(x, act_type))
        if y.shape != x.shape or y.dtype != x.dtype:
            ok = False
        if not jnp.allclose(y, ref_fn(x), atol=1e-5, rtol=1e-5):
            ok = False

    # Pallas kernel path directly (2048 elems -> rows=16, block_rows=8, grid=(2,)).
    for act_type in ("relu", "tanh", "sigmoid"):
        y = jax.block_until_ready(_activation_impl(x, act_type))
        if y.shape != x.shape or y.dtype != x.dtype:
            ok = False
        if not jnp.allclose(y, refs[act_type](x), atol=1e-5, rtol=1e-5):
            ok = False

    # Misaligned-size fallback (360 elements, not a multiple of 128).
    x_odd = jax.random.normal(key, (2, 4, 9, 5), dtype=jnp.float32)
    y_odd = jax.block_until_ready(activation(x_odd, "relu"))
    if not jnp.allclose(y_odd, jnp.maximum(x_odd, 0.0)):
        ok = False

    if ok:
        print("KERNEL_OK")
</pallas_src>

<mosaic_0001>
module attributes {stable_mosaic.version = 11 : i64} {
  func.func @_activation_kernel(%arg0: i32, %arg1: memref<8x128xf32, #tpu.memory_space<vmem>>, %arg2: memref<8x128xf32, #tpu.memory_space<vmem>>) attributes {dimension_semantics = [#tpu.dimension_semantics<parallel>], iteration_bounds = array<i64: 2>, scalar_prefetch = 0 : i64, scratch_operands = 0 : i64, tpu.core_type = #tpu.core_type<tc>, window_params = [{transform_indices = @transform_0, window_bounds = array<i64: 8, 128>}, {transform_indices = @transform_1, window_bounds = array<i64: 8, 128>}]} {
    %c0 = arith.constant 0 : index
    %c0_0 = arith.constant 0 : index
    %0 = vector.load %arg1[%c0, %c0_0] : memref<8x128xf32, #tpu.memory_space<vmem>>, vector<8x128xf32>
    %cst = arith.constant 0.000000e+00 : f32
    %1 = vector.broadcast %cst : f32 to vector<8x128xf32>
    %2 = arith.maximumf %0, %1 : vector<8x128xf32>
    %c0_1 = arith.constant 0 : index
    %c0_2 = arith.constant 0 : index
    %3 = vector.load %arg2[%c0_1, %c0_2] : memref<8x128xf32, #tpu.memory_space<vmem>>, vector<8x128xf32>
    tpu.vector_store %arg2[%c0_1, %c0_2], %2 {strides = array<i32>} : memref<8x128xf32, #tpu.memory_space<vmem>>, vector<8x128xf32>,
    return
  }
  func.func @transform_0(%arg0: i32) -> (i32, i32) {
    %c0_i32 = arith.constant 0 : i32
    %c0_i32_0 = arith.constant 0 : i32
    return %arg0, %c0_i32 : i32, i32
  }
  func.func @transform_1(%arg0: i32) -> (i32, i32) {
    %c0_i32 = arith.constant 0 : i32
    %c0_i32_0 = arith.constant 0 : i32
    return %arg0, %c0_i32 : i32, i32
  }
}

</mosaic_0001>

<llo_original>
// kernel: _activation_impl.1
$region0: #{_activation_impl.1}
  #allocation0 [shape = 'u32[]', space=smem, size = 0x4, offset = 0x4, fixed_abs, tag = 'smem constant byte address 0x4 - core index']
  #allocation1 [shape = 'u32[144,128]{1,0:T(1,128)}', space=vmem, size = 0x12000, scoped, tag = 'internal scratch']
  %s0 = inlined_call_operand.vmem [shape: f32[16,128], index: 0, kind: input, shape index: {}]
  %s1 = inlined_call_operand.vmem [shape: f32[16,128], index: 1, kind: output, shape index: {}]
  %s2 = sld [smem:[#allocation0]]
  $region37: #{_activation_impl.1} parent=0
    _
  %s4 = ssub.s32 1, %s2
  %s5 = scalar_select 0, %s4, %s2
  loop: start=0, step=1, limit=4
  $region2: #{_activation_impl.1} parent=0 // loop_pre_header
    _
  $region3: #{_activation_impl.1} parent=0 // loop_header
    %s7 = sphi 0, %s11
    %p8 = scmp.ge.s32.totalorder %s7, 4
    %s17 = sphi 0, %s19
    %s20 = sphi 0, %s17
    %s21 = sphi 0, %s20
    %s37 = sphi 0, %s21
    %s43 = sphi 0, %s45
    %s46 = sphi 0, %s43
    %s47 = sphi 0, %s46
    %s63 = sphi 0, %s47
  $region4: #{_activation_impl.1} parent=0 // loop_header_branch
    %10 = sbr.rel (%p8) target = $region8
  $region5: #{_activation_impl.1} parent=0 // loop_body
    %s12 = ssub.s32 %s7, 1
    %s13 = ssub.s32 %s7, 2
    %s14 = sadd.s32 %s7, 1
    %s15 = ssub.s32 %s7, %s14
    %p16 = scmp.eq.s32.totalorder %s15, 0
    %s18 = sadd.s32 %s17, 1
    %s19 = scalar_select %p16, %s17, %s18
    %p22 = pneg %p16
    %p23 = scmp.eq.s32.totalorder %s7, 1
    %p24 = por %p22, %p23
    %p25 = scmp.ne.s32.totalorder %s17, %s20
    %p26 = scmp.eq.s32.totalorder %s7, 0
    %p27 = por %p25, %p26
    %p28 = scmp.ne.s32.totalorder %s17, %s20
    %p29 = scmp.eq.s32.totalorder %s12, 1
    %p30 = por %p28, %p29
    %p31 = scmp.ne.s32.totalorder %s20, %s21
    %p32 = scmp.eq.s32.totalorder %s12, 0
    %p33 = por %p31, %p32
    %p34 = scmp.ne.s32.totalorder %s20, %s21
    %p35 = scmp.eq.s32.totalorder %s13, 1
    %p36 = por %p34, %p35
    %p38 = scmp.ne.s32.totalorder %s21, %s37
    %p39 = scmp.eq.s32.totalorder %s13, 0
    %p40 = por %p38, %p39
    %s41 = ssub.s32 %s7, %s14
    %p42 = scmp.eq.s32.totalorder %s41, 0
    %s44 = sadd.s32 %s43, 1
    %s45 = scalar_select %p42, %s43, %s44
    %p48 = pneg %p42
    %p49 = scmp.eq.s32.totalorder %s7, 1
    %p50 = por %p48, %p49
    %p51 = scmp.ne.s32.totalorder %s43, %s46
    %p52 = scmp.eq.s32.totalorder %s7, 0
    %p53 = por %p51, %p52
    %p54 = scmp.ne.s32.totalorder %s43, %s46
    %p55 = scmp.eq.s32.totalorder %s12, 1
    %p56 = por %p54, %p55
    %p57 = scmp.ne.s32.totalorder %s46, %s47
    %p58 = scmp.eq.s32.totalorder %s12, 0
    %p59 = por %p57, %p58
    %p60 = scmp.ne.s32.totalorder %s46, %s47
    %p61 = scmp.eq.s32.totalorder %s13, 1
    %p62 = por %p60, %p61
    %p64 = scmp.ne.s32.totalorder %s47, %s63
    %p65 = scmp.eq.s32.totalorder %s13, 0
    %p66 = por %p64, %p65
    %p67 = scmp.le.s32.totalorder 1, %s7
    %p68 = scmp.lt.s32.totalorder %s7, 3
    %p69 = pnand %p67, %p68
    %p70 = pneg %p69
    // Predicated region
    $region9: #{_activation_impl.1} parent=5 // pred_check
      _
    $region10: #{_activation_impl.1} parent=5 // pred_check_branch
      %72 = sbr.rel (%p69) target = $region12
    $region11: #{_activation_impl.1} parent=5 // pred_region
      %s73 = ssub.s32 %s7, 1
    $region12: #{_activation_impl.1} parent=5 // pred_fallthru
      _
    %p74 = scmp.lt.s32.totalorder %s7, 2
    // Predicated region
    $region13: #{_activation_impl.1} parent=5 // pred_check
      %p75 = pneg %p74
    $region14: #{_activation_impl.1} parent=5 // pred_check_branch
      %77 = sbr.rel (%p75) target = $region16
    $region15: #{_activation_impl.1} parent=5 // pred_region
      // Predicated region
      $region17: #{_activation_impl.1} parent=15 // pred_check
        %p78 = pneg %p27
      $region18: #{_activation_impl.1} parent=15 // pred_check_branch
        %80 = sbr.rel (%p78) target = $region20
      $region19: #{_activation_impl.1} parent=15 // pred_region
        %p81 = scmp.lt.s32.totalorder %s7, 1
        %s82 = scalar_select %p81, %s7, 1
        %s83 = smul.addr %s82, 8
        %s84 = scalar_lea.vmem %s0, %s83
      $region20: #{_activation_impl.1} parent=15 // pred_fallthru
        _
    $region16: #{_activation_impl.1} parent=5 // pred_fallthru
      _
    %p85 = scmp.le.s32.totalorder 1, %s7
    %p86 = scmp.lt.s32.totalorder %s7, 3
    %p87 = pnand %p85, %p86
    %p88 = pneg %p87
    // Predicated region
    $region21: #{_activation_impl.1} parent=5 // pred_check
      _
    $region22: #{_activation_impl.1} parent=5 // pred_check_branch
      %90 = sbr.rel (%p87) target = $region24
    $region23: #{_activation_impl.1} parent=5 // pred_region
      %s91 = ssub.s32 %s7, 1
      %p92 = scmp.lt.s32.totalorder %s12, 1
      %s93 = scalar_select %p92, %s12, 1
      %s94 = smul.addr %s93, 8
      %s95 = scalar_lea.vmem %s0, %s94
      %p96 = pneg %p33
      %p97 = pneg %p30
      %p98 = pneg %p59
      %p99 = pneg %p56
      %p100 = scmp.lt.s32.totalorder %s12, 1
      %s101 = scalar_select %p100, %s12, 1
      %s102 = smul.addr %s101, 8
      %s103 = scalar_lea.vmem %s1, %s102
      %p104 = scmp.lt.s32.totalorder %s12, 1
      %s105 = scalar_select %p104, %s12, 1
      %s106 = smul.addr %s105, 8
      %s107 = scalar_lea.vmem %s0, %s106
      %p108 = scmp.lt.s32.totalorder %s12, 1
      %s109 = scalar_select %p108, %s12, 1
      %s110 = smul.addr %s109, 8
      %s111 = scalar_lea.vmem %s1, %s110
      %v112 = vld [vmem:[%s107] sm:$0xff]
      %v113 = vmax.f32 %v112, 0.0
      %114 = vst [vmem:[%s111] sm:$0xff] %v113
      %p115 = scmp.lt.s32.totalorder %s12, 1
      %s116 = scalar_select %p115, %s12, 1
      %s117 = smul.addr %s116, 8
      %s118 = scalar_lea.vmem %s1, %s117
      // Predicated region
      $region25: #{_activation_impl.1} parent=23 // pred_check
        %p119 = pneg %p56
      $region26: #{_activation_impl.1} parent=23 // pred_check_branch
        %121 = sbr.rel (%p119) target = $region28
      $region27: #{_activation_impl.1} parent=23 // pred_region
        _
      $region28: #{_activation_impl.1} parent=23 // pred_fallthru
        _
    $region24: #{_activation_impl.1} parent=5 // pred_fallthru
      _
    %p122 = scmp.le.s32.totalorder 2, %s7
    // Predicated region
    $region29: #{_activation_impl.1} parent=5 // pred_check
      %p123 = pneg %p122
    $region30: #{_activation_impl.1} parent=5 // pred_check_branch
      %125 = sbr.rel (%p123) target = $region32
    $region31: #{_activation_impl.1} parent=5 // pred_region
      %s126 = ssub.s32 %s7, 2
      // Predicated region
      $region33: #{_activation_impl.1} parent=31 // pred_check
        %p127 = pneg %p62
      $region34: #{_activation_impl.1} parent=31 // pred_check_branch
        %129 = sbr.rel (%p127) target = $region36
      $region35: #{_activation_impl.1} parent=31 // pred_region
        %p130 = scmp.lt.s32.totalorder %s13, 1
        %s131 = scalar_select %p130, %s13, 1
        %s132 = smul.addr %s131, 8
        %s133 = scalar_lea.vmem %s1, %s132
      $region36: #{_activation_impl.1} parent=31 // pred_fallthru
        _
    $region32: #{_activation_impl.1} parent=5 // pred_fallthru
      _
  $region6: #{_activation_impl.1} parent=0 // loop_footer
    %s11 = sadd.s32 1, %s7
  $region7: #{_activation_impl.1} parent=0 // loop_footer_branch
    %6 = sbr.rel target = $region3
  $region8: #{_activation_impl.1} parent=0 // loop_exit
    _

</llo_original>
